<compile_context>
chip_gen: v7x
topology: tpu7x:2x2x1
jax: 0.10.0
libtpu: 0.0.40
codegen_flags: <defaults>
</compile_context>

<pallas_src>
import jax
import jax.numpy as jnp
from jax.experimental import pallas as pl
from jax.experimental.pallas import tpu as pltpu

INPUTS = 610
HIDDEN1 = 100
HIDDEN2 = 50
OUTPUTS = 23
NEG_SLOPE = 0.01  # nn.LeakyReLU default

# Lane-dense padded widths for the small weight N dims (cheap: weights are
# resident, DMA'd once per call).
H1_PAD = 128   # 100 -> 128
H2_PAD = 128   # 50  -> 128
OUT_PAD = 128  # 23  -> 128

# Batch tile: big enough to amortize per-step overhead, small enough to fit
# the v5e default scoped-VMEM limit with double buffering.
MAX_TB = 1024


def _round_up(x, m):
    return ((x + m - 1) // m) * m


def _leaky_relu(x):
    return jnp.where(x > 0, x, NEG_SLOPE * x)


def mlp_kernel(x_ref, w1_ref, b1_ref, w2_ref, b2_ref, w3_ref, b3_ref, o_ref):
    x = x_ref[...]                                                       # (TB, 610)
    h1 = jnp.dot(x, w1_ref[...], preferred_element_type=jnp.float32)    # (TB, 128)
    h1 = _leaky_relu(h1 + b1_ref[...])
    h2 = jnp.dot(h1.astype(w2_ref.dtype), w2_ref[...],
                 preferred_element_type=jnp.float32)                    # (TB, 128)
    h2 = _leaky_relu(h2 + b2_ref[...])
    o = jnp.dot(h2.astype(w3_ref.dtype), w3_ref[...],
                preferred_element_type=jnp.float32)                     # (TB, 128)
    o_ref[...] = (o + b3_ref[...]).astype(o_ref.dtype)


def _pad_params(params, wdtype):
    """Zero-pad weight N dims (and matching biases) to lane-dense 128.

    Exact: padded weight columns and bias lanes are 0, LeakyReLU(0) = 0, so
    padded hidden lanes stay 0 and contribute nothing downstream.
    """
    w1 = jnp.zeros((INPUTS, H1_PAD), wdtype).at[:, :HIDDEN1].set(
        params["w1"].astype(wdtype))
    b1 = jnp.zeros((1, H1_PAD), jnp.float32).at[:, :HIDDEN1].set(params["b1"])
    w2 = jnp.zeros((H1_PAD, H2_PAD), wdtype).at[:HIDDEN1, :HIDDEN2].set(
        params["w2"].astype(wdtype))
    b2 = jnp.zeros((1, H2_PAD), jnp.float32).at[:, :HIDDEN2].set(params["b2"])
    w3 = jnp.zeros((H2_PAD, OUT_PAD), wdtype).at[:HIDDEN2, :OUTPUTS].set(
        params["w3"].astype(wdtype))
    b3 = jnp.zeros((1, OUT_PAD), jnp.float32).at[:, :OUTPUTS].set(params["b3"])
    return w1, b1, w2, b2, w3, b3


def agent_forward(x, params, *, use_bf16=False):
    """x: (B, INPUTS) f32. Returns (B, OUTPUTS) f32.

    use_bf16=True casts x / weights to bf16 (f32 accumulation) — faster on
    v5e, slightly different numerics vs. the PyTorch f32 reference.
    """
    B = x.shape[0]
    if B == 0:
        return jnp.zeros((0, OUTPUTS), jnp.float32)

    wdtype = jnp.bfloat16 if use_bf16 else jnp.float32
    x_in = x.astype(wdtype)

    TB = min(MAX_TB, _round_up(B, 8))
    n_blocks = pl.cdiv(B, TB)          # partial last block handled by Pallas

    w1, b1, w2, b2, w3, b3 = _pad_params(params, wdtype)

    const2d = lambda i: (0, 0)         # weights/biases: resident, DMA'd once
    in_specs = [
        pl.BlockSpec((TB, INPUTS), lambda i: (i, 0)),        # x streamed by batch
        pl.BlockSpec((INPUTS, H1_PAD), const2d),
        pl.BlockSpec((1, H1_PAD), const2d),
        pl.BlockSpec((H1_PAD, H2_PAD), const2d),
        pl.BlockSpec((1, H2_PAD), const2d),
        pl.BlockSpec((H2_PAD, OUT_PAD), const2d),
        pl.BlockSpec((1, OUT_PAD), const2d),
    ]
    out_spec = pl.BlockSpec((TB, OUT_PAD), lambda i: (i, 0))

    itemsize = 2 if use_bf16 else 4
    flops = 2 * B * (INPUTS * HIDDEN1 + HIDDEN1 * HIDDEN2 + HIDDEN2 * OUTPUTS)
    bytes_accessed = (
        itemsize * (B * INPUTS + INPUTS * H1_PAD + H1_PAD * H2_PAD + H2_PAD * OUT_PAD)
        + 4 * (B * OUT_PAD + H1_PAD + H2_PAD + OUT_PAD)
    )

    out_pad = pl.pallas_call(
        mlp_kernel,
        out_shape=jax.ShapeDtypeStruct((B, OUT_PAD), jnp.float32),
        grid=(n_blocks,),
        in_specs=in_specs,
        out_specs=out_spec,
        compiler_params=pltpu.CompilerParams(
            dimension_semantics=("parallel",),   # megacore sharding on v7x
            vmem_limit_bytes=32 << 20,
        ),
        cost_estimate=pl.CostEstimate(
            flops=flops, transcendentals=0, bytes_accessed=bytes_accessed
        ),
    )(x_in, w1, b1, w2, b2, w3, b3)

    # Lane slice outside the kernel (keeps in-kernel stores unmasked/lane-dense).
    return out_pad[:, :OUTPUTS]


def init_params(key):
    """Deterministic synthetic init (shapes match the nn.Linear layers)."""
    ks = jax.random.split(key, 6)

    def linear(kw, kb, fan_in, fan_out):
        bound = 1.0 / jnp.sqrt(float(fan_in))
        w = jax.random.uniform(kw, (fan_in, fan_out), jnp.float32, -bound, bound)
        b = jax.random.uniform(kb, (1, fan_out), jnp.float32, -bound, bound)
        return w, b

    w1, b1 = linear(ks[0], ks[1], INPUTS, HIDDEN1)
    w2, b2 = linear(ks[2], ks[3], HIDDEN1, HIDDEN2)
    w3, b3 = linear(ks[4], ks[5], HIDDEN2, OUTPUTS)
    return {"w1": w1, "b1": b1, "w2": w2, "b2": b2, "w3": w3, "b3": b3}


def reference_forward(x, p):
    h1 = _leaky_relu(x @ p["w1"] + p["b1"])
    h2 = _leaky_relu(h1 @ p["w2"] + p["b2"])
    return h2 @ p["w3"] + p["b3"]


if __name__ == "__main__":
    key = jax.random.PRNGKey(0)
    k_params, k_x = jax.random.split(key)

    B = 8
    params = init_params(k_params)
    x = jax.random.normal(k_x, (B, INPUTS), jnp.float32)

    out = agent_forward(x, params)
    out = jax.block_until_ready(out)

    ref = reference_forward(x, params)
    assert out.shape == (B, OUTPUTS)
    assert jnp.allclose(out, ref, atol=1e-4, rtol=1e-4)

    print("KERNEL_OK")
</pallas_src>

<mosaic_0001>
module attributes {stable_mosaic.version = 11 : i64} {
  func.func @mlp_kernel(%arg0: i32, %arg1: memref<8x610xf32, #tpu.memory_space<vmem>>, %arg2: memref<610x128xf32, #tpu.memory_space<vmem>>, %arg3: memref<1x128xf32, #tpu.memory_space<vmem>>, %arg4: memref<128x128xf32, #tpu.memory_space<vmem>>, %arg5: memref<1x128xf32, #tpu.memory_space<vmem>>, %arg6: memref<128x128xf32, #tpu.memory_space<vmem>>, %arg7: memref<1x128xf32, #tpu.memory_space<vmem>>, %arg8: memref<8x128xf32, #tpu.memory_space<vmem>>) attributes {dimension_semantics = [#tpu.dimension_semantics<parallel>], iteration_bounds = array<i64: 1>, scalar_prefetch = 0 : i64, scratch_operands = 0 : i64, tpu.core_type = #tpu.core_type<tc>, window_params = [{transform_indices = @transform_0, window_bounds = array<i64: 8, 610>}, {pipeline_mode = #tpu.pipeline_mode<synchronous>, transform_indices = @transform_1, window_bounds = array<i64: 610, 128>}, {pipeline_mode = #tpu.pipeline_mode<synchronous>, transform_indices = @transform_2, window_bounds = array<i64: 1, 128>}, {pipeline_mode = #tpu.pipeline_mode<synchronous>, transform_indices = @transform_3, window_bounds = array<i64: 128, 128>}, {pipeline_mode = #tpu.pipeline_mode<synchronous>, transform_indices = @transform_4, window_bounds = array<i64: 1, 128>}, {pipeline_mode = #tpu.pipeline_mode<synchronous>, transform_indices = @transform_5, window_bounds = array<i64: 128, 128>}, {pipeline_mode = #tpu.pipeline_mode<synchronous>, transform_indices = @transform_6, window_bounds = array<i64: 1, 128>}, {transform_indices = @transform_7, window_bounds = array<i64: 8, 128>}]} {
    %c0 = arith.constant 0 : index
    %c0_0 = arith.constant 0 : index
    %0 = vector.load %arg1[%c0, %c0_0] : memref<8x610xf32, #tpu.memory_space<vmem>>, vector<8x610xf32>
    %c0_1 = arith.constant 0 : index
    %c0_2 = arith.constant 0 : index
    %1 = vector.load %arg2[%c0_1, %c0_2] : memref<610x128xf32, #tpu.memory_space<vmem>>, vector<610x128xf32>
    %cst = arith.constant dense<0.000000e+00> : vector<8x128xf32>
    %2 = tpu.matmul %0, %1, %cst {dimension_numbers = #tpu.dot_dimension_numbers<[1], [0], [0], [1], [0, 0, 1, 1], [], []>} : vector<8x610xf32>, vector<610x128xf32>, vector<8x128xf32> -> vector<8x128xf32>
    %c0_3 = arith.constant 0 : index
    %c0_4 = arith.constant 0 : index
    %3 = vector.load %arg3[%c0_3, %c0_4] : memref<1x128xf32, #tpu.memory_space<vmem>>, vector<1x128xf32>
    %4 = vector.broadcast %3 : vector<1x128xf32> to vector<8x128xf32>
    %5 = arith.addf %2, %4 : vector<8x128xf32>
    %cst_5 = arith.constant 0.000000e+00 : f32
    %6 = vector.broadcast %cst_5 : f32 to vector<8x128xf32>
    %7 = arith.cmpf ogt, %5, %6 : vector<8x128xf32>
    %cst_6 = arith.constant 0.00999999977 : f32
    %8 = vector.broadcast %cst_6 : f32 to vector<8x128xf32>
    %9 = arith.mulf %8, %5 : vector<8x128xf32>
    %10 = arith.select %7, %5, %9 : vector<8x128xi1>, vector<8x128xf32>
    %c0_7 = arith.constant 0 : index
    %c0_8 = arith.constant 0 : index
    %11 = vector.load %arg4[%c0_7, %c0_8] : memref<128x128xf32, #tpu.memory_space<vmem>>, vector<128x128xf32>
    %cst_9 = arith.constant dense<0.000000e+00> : vector<8x128xf32>
    %12 = tpu.matmul %10, %11, %cst_9 {dimension_numbers = #tpu.dot_dimension_numbers<[1], [0], [0], [1], [0, 0, 1, 1], [], []>} : vector<8x128xf32>, vector<128x128xf32>, vector<8x128xf32> -> vector<8x128xf32>
    %c0_10 = arith.constant 0 : index
    %c0_11 = arith.constant 0 : index
    %13 = vector.load %arg5[%c0_10, %c0_11] : memref<1x128xf32, #tpu.memory_space<vmem>>, vector<1x128xf32>
    %14 = vector.broadcast %13 : vector<1x128xf32> to vector<8x128xf32>
    %15 = arith.addf %12, %14 : vector<8x128xf32>
    %cst_12 = arith.constant 0.000000e+00 : f32
    %16 = vector.broadcast %cst_12 : f32 to vector<8x128xf32>
    %17 = arith.cmpf ogt, %15, %16 : vector<8x128xf32>
    %cst_13 = arith.constant 0.00999999977 : f32
    %18 = vector.broadcast %cst_13 : f32 to vector<8x128xf32>
    %19 = arith.mulf %18, %15 : vector<8x128xf32>
    %20 = arith.select %17, %15, %19 : vector<8x128xi1>, vector<8x128xf32>
    %c0_14 = arith.constant 0 : index
    %c0_15 = arith.constant 0 : index
    %21 = vector.load %arg6[%c0_14, %c0_15] : memref<128x128xf32, #tpu.memory_space<vmem>>, vector<128x128xf32>
    %cst_16 = arith.constant dense<0.000000e+00> : vector<8x128xf32>
    %22 = tpu.matmul %20, %21, %cst_16 {dimension_numbers = #tpu.dot_dimension_numbers<[1], [0], [0], [1], [0, 0, 1, 1], [], []>} : vector<8x128xf32>, vector<128x128xf32>, vector<8x128xf32> -> vector<8x128xf32>
    %c0_17 = arith.constant 0 : index
    %c0_18 = arith.constant 0 : index
    %23 = vector.load %arg7[%c0_17, %c0_18] : memref<1x128xf32, #tpu.memory_space<vmem>>, vector<1x128xf32>
    %24 = vector.broadcast %23 : vector<1x128xf32> to vector<8x128xf32>
    %25 = arith.addf %22, %24 : vector<8x128xf32>
    %c0_19 = arith.constant 0 : index
    %c0_20 = arith.constant 0 : index
    %26 = vector.load %arg8[%c0_19, %c0_20] : memref<8x128xf32, #tpu.memory_space<vmem>>, vector<8x128xf32>
    tpu.vector_store %arg8[%c0_19, %c0_20], %25 {strides = array<i32>} : memref<8x128xf32, #tpu.memory_space<vmem>>, vector<8x128xf32>,
    return
  }
  func.func @transform_0(%arg0: i32) -> (i32, i32) {
    %c0_i32 = arith.constant 0 : i32
    %c0_i32_0 = arith.constant 0 : i32
    return %arg0, %c0_i32 : i32, i32
  }
  func.func @transform_1(%arg0: i32) -> (i32, i32) {
    %c0_i32 = arith.constant 0 : i32
    %c0_i32_0 = arith.constant 0 : i32
    %c0_i32_1 = arith.constant 0 : i32
    return %c0_i32, %c0_i32_0 : i32, i32
  }
  func.func @transform_2(%arg0: i32) -> (i32, i32) {
    %c0_i32 = arith.constant 0 : i32
    %c0_i32_0 = arith.constant 0 : i32
    %c0_i32_1 = arith.constant 0 : i32
    return %c0_i32, %c0_i32_0 : i32, i32
  }
  func.func @transform_3(%arg0: i32) -> (i32, i32) {
    %c0_i32 = arith.constant 0 : i32
    %c0_i32_0 = arith.constant 0 : i32
    %c0_i32_1 = arith.constant 0 : i32
    return %c0_i32, %c0_i32_0 : i32, i32
  }
  func.func @transform_4(%arg0: i32) -> (i32, i32) {
    %c0_i32 = arith.constant 0 : i32
    %c0_i32_0 = arith.constant 0 : i32
    %c0_i32_1 = arith.constant 0 : i32
    return %c0_i32, %c0_i32_0 : i32, i32
  }
  func.func @transform_5(%arg0: i32) -> (i32, i32) {
    %c0_i32 = arith.constant 0 : i32
    %c0_i32_0 = arith.constant 0 : i32
    %c0_i32_1 = arith.constant 0 : i32
    return %c0_i32, %c0_i32_0 : i32, i32
  }
  func.func @transform_6(%arg0: i32) -> (i32, i32) {
    %c0_i32 = arith.constant 0 : i32
    %c0_i32_0 = arith.constant 0 : i32
    %c0_i32_1 = arith.constant 0 : i32
    return %c0_i32, %c0_i32_0 : i32, i32
  }
  func.func @transform_7(%arg0: i32) -> (i32, i32) {
    %c0_i32 = arith.constant 0 : i32
    %c0_i32_0 = arith.constant 0 : i32
    return %arg0, %c0_i32 : i32, i32
  }
}

</mosaic_0001>

<llo_original>
// kernel: tpu_custom_call.1
$region0: #{tpu_custom_call.1}
  #allocation0 [shape = 'u32[]', space=smem, size = 0x4, offset = 0x4, fixed_abs, tag = 'smem constant byte address 0x4 - core index']
  #allocation1 [shape = 'u32[144,128]{1,0:T(1,128)}', space=vmem, size = 0x12000, scoped, tag = 'internal scratch']
  %s0 = inlined_call_operand.hbm [shape: f32[8,610], index: 0, kind: input, shape index: {}]
  %s1 = inlined_call_operand.hbm [shape: f32[610,128], index: 1, kind: input, shape index: {}]
  %s2 = inlined_call_operand.vmem [shape: f32[1,128], index: 2, kind: input, shape index: {}]
  %s3 = inlined_call_operand.hbm [shape: f32[128,128], index: 3, kind: input, shape index: {}]
  %s4 = inlined_call_operand.vmem [shape: f32[1,128], index: 4, kind: input, shape index: {}]
  %s5 = inlined_call_operand.hbm [shape: f32[128,128], index: 5, kind: input, shape index: {}]
  %s6 = inlined_call_operand.vmem [shape: f32[1,128], index: 6, kind: input, shape index: {}]
  %s7 = inlined_call_operand.hbm [shape: f32[8,128], index: 7, kind: output, shape index: {}]
  %s8 = sld [smem:[#allocation0]]
  $region54: #{tpu_custom_call.1} parent=0
    _
  %s10 = ssub.s32 1, %s8
  %s11 = scalar_select 0, %s10, %s8
  $region1: #{tpu_custom_call.1} parent=0
    #allocation2 [shape = 'u8[20480]{0}', space=vmem, size = 0x5000, scoped, tag = 'input window, operand 0, single buffered']
    #allocation3 [shape = 's32[1]{0}', space=sflag, size = 0x4, scoped, tag = 'scoped memory for tpu_custom_call.1']
    #allocation4 [shape = 's32[1]{0}', space=sflag, size = 0x4, scoped, tag = 'scoped memory for tpu_custom_call.1']
    #allocation5 [shape = 'u8[315392]{0}', space=vmem, size = 0x4d000, scoped, tag = 'input window, operand 1, single buffered']
    #allocation6 [shape = 's32[1]{0}', space=sflag, size = 0x4, scoped, tag = 'scoped memory for tpu_custom_call.1']
    #allocation7 [shape = 'u8[65536]{0}', space=vmem, size = 0x10000, scoped, tag = 'input window, operand 3, single buffered']
    #allocation8 [shape = 'u8[65536]{0}', space=vmem, size = 0x10000, scoped, tag = 'input window, operand 5, single buffered']
    #allocation9 [shape = 's32[1]{0}', space=sflag, size = 0x4, scoped, tag = 'scoped memory for tpu_custom_call.1']
    #allocation10 [shape = 'u8[4096]{0}', space=vmem, size = 0x1000, scoped, tag = 'output window, operand 0, single buffered']
    %12 = vsyncpa [#allocation3], 0
    %13 = vsyncpa [#allocation6], 0
    %14 = vsyncpa [#allocation9], 0
    %15 = vsyncpa [#allocation4], 0
    // Predicated region
    $region2: #{tpu_custom_call.1} parent=1 // pred_check
      _
    $region3: #{tpu_custom_call.1} parent=1 // pred_check_branch
      %17 = sbr.rel (0) target = $region5
    $region4: #{tpu_custom_call.1} parent=1 // pred_region
      %s19 = ssub.s32 640, 640
      %20 = vsyncadd [#allocation3], %s19
      %s22 = sshll.u32 [#allocation2], 4
      %s23 = int_to_ptr.vmem [resolvable:$true] %s22
      %25 = dma.hbm_to_vmem [thread:$0]  %s0, 640, %s23, [#allocation3]
    $region5: #{tpu_custom_call.1} parent=1 // pred_fallthru
      _
    // Predicated region
    $region6: #{tpu_custom_call.1} parent=1 // pred_check
      _
    $region7: #{tpu_custom_call.1} parent=1 // pred_check_branch
      %27 = sbr.rel (0) target = $region9
    $region8: #{tpu_custom_call.1} parent=1 // pred_region
      %s29 = ssub.s32 9856, 9856
      %30 = vsyncadd [#allocation6], %s29
      %s31 = sshll.u32 [#allocation5], 4
      %s32 = int_to_ptr.vmem [resolvable:$true] %s31
      %37 = dma.hbm_to_vmem [thread:$0]  %s1, 9856, %s32, [#allocation6], 128, 128, 8
    $region9: #{tpu_custom_call.1} parent=1 // pred_fallthru
      _
    // Predicated region
    $region10: #{tpu_custom_call.1} parent=1 // pred_check
      _
    $region11: #{tpu_custom_call.1} parent=1 // pred_check_branch
      %39 = sbr.rel (0) target = $region13
    $region12: #{tpu_custom_call.1} parent=1 // pred_region
      _
    $region13: #{tpu_custom_call.1} parent=1 // pred_fallthru
      _
    // Predicated region
    $region14: #{tpu_custom_call.1} parent=1 // pred_check
      _
    $region15: #{tpu_custom_call.1} parent=1 // pred_check_branch
      %41 = sbr.rel (0) target = $region17
    $region16: #{tpu_custom_call.1} parent=1 // pred_region
      %s43 = ssub.s32 2048, 2048
      %44 = vsyncadd [#allocation6], %s43
      %s45 = sshll.u32 [#allocation7], 4
      %s46 = int_to_ptr.vmem [resolvable:$true] %s45
      %51 = dma.hbm_to_vmem [thread:$0]  %s3, 2048, %s46, [#allocation6], 128, 128, 8
    $region17: #{tpu_custom_call.1} parent=1 // pred_fallthru
      _
    // Predicated region
    $region18: #{tpu_custom_call.1} parent=1 // pred_check
      _
    $region19: #{tpu_custom_call.1} parent=1 // pred_check_branch
      %53 = sbr.rel (0) target = $region21
    $region20: #{tpu_custom_call.1} parent=1 // pred_region
      _
    $region21: #{tpu_custom_call.1} parent=1 // pred_fallthru
      _
    // Predicated region
    $region22: #{tpu_custom_call.1} parent=1 // pred_check
      _
    $region23: #{tpu_custom_call.1} parent=1 // pred_check_branch
      %55 = sbr.rel (0) target = $region25
    $region24: #{tpu_custom_call.1} parent=1 // pred_region
      %s57 = ssub.s32 2048, 2048
      %58 = vsyncadd [#allocation9], %s57
      %s59 = sshll.u32 [#allocation8], 4
      %s60 = int_to_ptr.vmem [resolvable:$true] %s59
      %65 = dma.hbm_to_vmem [thread:$0]  %s5, 2048, %s60, [#allocation9], 128, 128, 8
    $region25: #{tpu_custom_call.1} parent=1 // pred_fallthru
      _
    // Predicated region
    $region26: #{tpu_custom_call.1} parent=1 // pred_check
      _
    $region27: #{tpu_custom_call.1} parent=1 // pred_check_branch
      %67 = sbr.rel (0) target = $region29
    $region28: #{tpu_custom_call.1} parent=1 // pred_region
      _
    $region29: #{tpu_custom_call.1} parent=1 // pred_fallthru
      _
    // Predicated region
    $region30: #{tpu_custom_call.1} parent=1 // pred_check
      _
    $region31: #{tpu_custom_call.1} parent=1 // pred_check_branch
      %69 = sbr.rel (0) target = $region33
    $region32: #{tpu_custom_call.1} parent=1 // pred_region
      %70 = dma.done [#allocation3], 640
    $region33: #{tpu_custom_call.1} parent=1 // pred_fallthru
      _
    // Predicated region
    $region34: #{tpu_custom_call.1} parent=1 // pred_check
      _
    $region35: #{tpu_custom_call.1} parent=1 // pred_check_branch
      %72 = sbr.rel (0) target = $region37
    $region36: #{tpu_custom_call.1} parent=1 // pred_region
      %73 = dma.done [#allocation6], 9856
    $region37: #{tpu_custom_call.1} parent=1 // pred_fallthru
      _
    // Predicated region
    $region38: #{tpu_custom_call.1} parent=1 // pred_check
      _
    $region39: #{tpu_custom_call.1} parent=1 // pred_check_branch
      %75 = sbr.rel (0) target = $region41
    $region40: #{tpu_custom_call.1} parent=1 // pred_region
      %76 = dma.done [#allocation6], 2048
    $region41: #{tpu_custom_call.1} parent=1 // pred_fallthru
      _
    // Predicated region
    $region42: #{tpu_custom_call.1} parent=1 // pred_check
      _
    $region43: #{tpu_custom_call.1} parent=1 // pred_check_branch
      %78 = sbr.rel (0) target = $region45
    $region44: #{tpu_custom_call.1} parent=1 // pred_region
      %79 = dma.done [#allocation9], 2048
    $region45: #{tpu_custom_call.1} parent=1 // pred_fallthru
      _
    %v80 = vld [vmem:[#allocation2] sm:$0xff]
    %v81 = vld [vmem:[#allocation2 + $0x8] sm:$0xff]
    %v82 = vld [vmem:[#allocation2 + $0x10] sm:$0xff]
    %v83 = vld [vmem:[#allocation2 + $0x18] sm:$0xff]
    %v84 = vld [vmem:[#allocation2 + $0x20] sm:$0xff]
    %v85 = vld [vmem:[#allocation5] sm:$0xff]
    %v86 = vld [vmem:[#allocation5 + $0x8] sm:$0xff]
    %v87 = vld [vmem:[#allocation5 + $0x10] sm:$0xff]
    %v88 = vld [vmem:[#allocation5 + $0x18] sm:$0xff]
    %v89 = vld [vmem:[#allocation5 + $0x20] sm:$0xff]
    %v90 = vld [vmem:[#allocation5 + $0x28] sm:$0xff]
    %v91 = vld [vmem:[#allocation5 + $0x30] sm:$0xff]
    %v92 = vld [vmem:[#allocation5 + $0x38] sm:$0xff]
    %v93 = vld [vmem:[#allocation5 + $0x40] sm:$0xff]
    %v94 = vld [vmem:[#allocation5 + $0x48] sm:$0xff]
    %v95 = vld [vmem:[#allocation5 + $0x50] sm:$0xff]
    %v96 = vld [vmem:[#allocation5 + $0x58] sm:$0xff]
    %v97 = vld [vmem:[#allocation5 + $0x60] sm:$0xff]
    %v98 = vld [vmem:[#allocation5 + $0x68] sm:$0xff]
    %v99 = vld [vmem:[#allocation5 + $0x70] sm:$0xff]
    %v100 = vld [vmem:[#allocation5 + $0x78] sm:$0xff]
    %v101 = vld [vmem:[#allocation5 + $0x80] sm:$0xff]
    %v102 = vld [vmem:[#allocation5 + $0x88] sm:$0xff]
    %v103 = vld [vmem:[#allocation5 + $0x90] sm:$0xff]
    %v104 = vld [vmem:[#allocation5 + $0x98] sm:$0xff]
    %v105 = vld [vmem:[#allocation5 + $0xa0] sm:$0xff]
    %v106 = vld [vmem:[#allocation5 + $0xa8] sm:$0xff]
    %v107 = vld [vmem:[#allocation5 + $0xb0] sm:$0xff]
    %v108 = vld [vmem:[#allocation5 + $0xb8] sm:$0xff]
    %v109 = vld [vmem:[#allocation5 + $0xc0] sm:$0xff]
    %v110 = vld [vmem:[#allocation5 + $0xc8] sm:$0xff]
    %v111 = vld [vmem:[#allocation5 + $0xd0] sm:$0xff]
    %v112 = vld [vmem:[#allocation5 + $0xd8] sm:$0xff]
    %v113 = vld [vmem:[#allocation5 + $0xe0] sm:$0xff]
    %v114 = vld [vmem:[#allocation5 + $0xe8] sm:$0xff]
    %v115 = vld [vmem:[#allocation5 + $0xf0] sm:$0xff]
    %v116 = vld [vmem:[#allocation5 + $0xf8] sm:$0xff]
    %v117 = vld [vmem:[#allocation5 + $0x100] sm:$0xff]
    %v118 = vld [vmem:[#allocation5 + $0x108] sm:$0xff]
    %v119 = vld [vmem:[#allocation5 + $0x110] sm:$0xff]
    %v120 = vld [vmem:[#allocation5 + $0x118] sm:$0xff]
    %v121 = vld [vmem:[#allocation5 + $0x120] sm:$0xff]
    %v122 = vld [vmem:[#allocation5 + $0x128] sm:$0xff]
    %v123 = vld [vmem:[#allocation5 + $0x130] sm:$0xff]
    %v124 = vld [vmem:[#allocation5 + $0x138] sm:$0xff]
    %v125 = vld [vmem:[#allocation5 + $0x140] sm:$0xff]
    %v126 = vld [vmem:[#allocation5 + $0x148] sm:$0xff]
    %v127 = vld [vmem:[#allocation5 + $0x150] sm:$0xff]
    %v128 = vld [vmem:[#allocation5 + $0x158] sm:$0xff]
    %v129 = vld [vmem:[#allocation5 + $0x160] sm:$0xff]
    %v130 = vld [vmem:[#allocation5 + $0x168] sm:$0xff]
    %v131 = vld [vmem:[#allocation5 + $0x170] sm:$0xff]
    %v132 = vld [vmem:[#allocation5 + $0x178] sm:$0xff]
    %v133 = vld [vmem:[#allocation5 + $0x180] sm:$0xff]
    %v134 = vld [vmem:[#allocation5 + $0x188] sm:$0xff]
    %v135 = vld [vmem:[#allocation5 + $0x190] sm:$0xff]
    %v136 = vld [vmem:[#allocation5 + $0x198] sm:$0xff]
    %v137 = vld [vmem:[#allocation5 + $0x1a0] sm:$0xff]
    %v138 = vld [vmem:[#allocation5 + $0x1a8] sm:$0xff]
    %v139 = vld [vmem:[#allocation5 + $0x1b0] sm:$0xff]
    %v140 = vld [vmem:[#allocation5 + $0x1b8] sm:$0xff]
    %v141 = vld [vmem:[#allocation5 + $0x1c0] sm:$0xff]
    %v142 = vld [vmem:[#allocation5 + $0x1c8] sm:$0xff]
    %v143 = vld [vmem:[#allocation5 + $0x1d0] sm:$0xff]
    %v144 = vld [vmem:[#allocation5 + $0x1d8] sm:$0xff]
    %v145 = vld [vmem:[#allocation5 + $0x1e0] sm:$0xff]
    %v146 = vld [vmem:[#allocation5 + $0x1e8] sm:$0xff]
    %v147 = vld [vmem:[#allocation5 + $0x1f0] sm:$0xff]
    %v148 = vld [vmem:[#allocation5 + $0x1f8] sm:$0xff]
    %v149 = vld [vmem:[#allocation5 + $0x200] sm:$0xff]
    %v150 = vld [vmem:[#allocation5 + $0x208] sm:$0xff]
    %v151 = vld [vmem:[#allocation5 + $0x210] sm:$0xff]
    %v152 = vld [vmem:[#allocation5 + $0x218] sm:$0xff]
    %v153 = vld [vmem:[#allocation5 + $0x220] sm:$0xff]
    %v154 = vld [vmem:[#allocation5 + $0x228] sm:$0xff]
    %v155 = vld [vmem:[#allocation5 + $0x230] sm:$0xff]
    %v156 = vld [vmem:[#allocation5 + $0x238] sm:$0xff]
    %v157 = vld [vmem:[#allocation5 + $0x240] sm:$0xff]
    %v158 = vld [vmem:[#allocation5 + $0x248] sm:$0xff]
    %v159 = vld [vmem:[#allocation5 + $0x250] sm:$0xff]
    %v160 = vld [vmem:[#allocation5 + $0x258] sm:$0xff]
    %v161 = vld [vmem:[#allocation5 + $0x260] sm:$0x3]
    %v162 = vld [vmem:[%s2] sm:$0x1]
    %v164 = vlaneseq
    %v165 = vshrl.u32 %v164, 7
    %v166 = vsub.s32 0, %v165
    %v167 = vrot.slane %v162, %v166
    %vm169 = vcmask 801792
    %v171 = vsel %vm169, %v84, 0
    %vm173 = vcmask 1041408
    %v175 = vsel %vm173, %v161, 0
    %177 = vmatprep.subr.mxu0 0.0
    %178 = vmatpush1.msra.mxu0 %v85
    %179 = vmatprep.subr.mxu0 0.0
    %180 = vmatpush1.msra.mxu0 %v86
    %181 = vmatprep.subr.mxu0 0.0
    %182 = vmatpush1.msra.mxu0 %v87
    %183 = vmatprep.subr.mxu0 0.0
    %184 = vmatpush1.msra.mxu0 %v88
    %185 = vmatprep.subr.mxu0 0.0
    %186 = vmatpush1.msra.mxu0 %v89
    %187 = vmatprep.subr.mxu0 0.0
    %188 = vmatpush1.msra.mxu0 %v90
    %189 = vmatprep.subr.mxu0 0.0
    %190 = vmatpush1.msra.mxu0 %v91
    %191 = vmatprep.subr.mxu0 0.0
    %192 = vmatpush1.msra.mxu0 %v92
    %193 = vmatprep.subr.mxu0 0.0
    %194 = vmatpush1.msra.mxu0 %v93
    %195 = vmatprep.subr.mxu0 0.0
    %196 = vmatpush1.msra.mxu0 %v94
    %197 = vmatprep.subr.mxu0 0.0
    %198 = vmatpush1.msra.mxu0 %v95
    %199 = vmatprep.subr.mxu0 0.0
    %200 = vmatpush1.msra.mxu0 %v96
    %201 = vmatprep.subr.mxu0 0.0
    %202 = vmatpush1.msra.mxu0 %v97
    %203 = vmatprep.subr.mxu0 0.0
    %204 = vmatpush1.msra.mxu0 %v98
    %205 = vmatprep.subr.mxu0 0.0
    %206 = vmatpush1.msra.mxu0 %v99
    %207 = vmatprep.subr.mxu0 0.0
    %208 = vmatpush1.msra.mxu0 %v100
    %209 = vmatprep.subr.mxu0 0.0
    %210 = vmatpush1.msra.mxu0 %v101
    %211 = vmatprep.subr.mxu0 0.0
    %212 = vmatpush1.msra.mxu0 %v102
    %213 = vmatprep.subr.mxu0 0.0
    %214 = vmatpush1.msra.mxu0 %v103
    %215 = vmatprep.subr.mxu0 0.0
    %216 = vmatpush1.msra.mxu0 %v104
    %217 = vmatprep.subr.mxu0 0.0
    %218 = vmatpush1.msra.mxu0 %v105
    %219 = vmatprep.subr.mxu0 0.0
    %220 = vmatpush1.msra.mxu0 %v106
    %221 = vmatprep.subr.mxu0 0.0
    %222 = vmatpush1.msra.mxu0 %v107
    %223 = vmatprep.subr.mxu0 0.0
    %224 = vmatpush1.msra.mxu0 %v108
    %225 = vmatprep.subr.mxu0 0.0
    %226 = vmatpush1.msra.mxu0 %v109
    %227 = vmatprep.subr.mxu0 0.0
    %228 = vmatpush1.msra.mxu0 %v110
    %229 = vmatprep.subr.mxu0 0.0
    %230 = vmatpush1.msra.mxu0 %v111
    %231 = vmatprep.subr.mxu0 0.0
    %232 = vmatpush1.msra.mxu0 %v112
    %233 = vmatprep.subr.mxu0 0.0
    %234 = vmatpush1.msra.mxu0 %v113
    %235 = vmatprep.subr.mxu0 0.0
    %236 = vmatpush1.msra.mxu0 %v114
    %237 = vmatprep.subr.mxu0 0.0
    %238 = vmatpush1.msra.mxu0 %v115
    %239 = vmatprep.subr.mxu0 0.0
    %240 = vmatpush1.msra.mxu0 %v116
    %241 = vmatprep.mubr.f32.mxu0 %v81
    %242 = vmatmul.mubr.f32.gmra.mrb[0].mxu0 %v80
    %v243 = vpop.f32.mrb[0].mxu0
    %v244 = vadd.f32 %v167, %v243
    %v245 = vpop.f32.mrb[0].mxu0
    %246 = vdwg.mxu0
    %247 = vmatprep.subr.mxu0 0.0
    %248 = vmatpush1.msra.mxu0 %v117
    %249 = vmatprep.subr.mxu0 0.0
    %250 = vmatpush1.msra.mxu0 %v118
    %251 = vmatprep.subr.mxu0 0.0
    %252 = vmatpush1.msra.mxu0 %v119
    %253 = vmatprep.subr.mxu0 0.0
    %254 = vmatpush1.msra.mxu0 %v120
    %255 = vmatprep.subr.mxu0 0.0
    %256 = vmatpush1.msra.mxu0 %v121
    %257 = vmatprep.subr.mxu0 0.0
    %258 = vmatpush1.msra.mxu0 %v122
    %259 = vmatprep.subr.mxu0 0.0
    %260 = vmatpush1.msra.mxu0 %v123
    %261 = vmatprep.subr.mxu0 0.0
    %262 = vmatpush1.msra.mxu0 %v124
    %263 = vmatprep.subr.mxu0 0.0
    %264 = vmatpush1.msra.mxu0 %v125
    %265 = vmatprep.subr.mxu0 0.0
    %266 = vmatpush1.msra.mxu0 %v126
    %267 = vmatprep.subr.mxu0 0.0
    %268 = vmatpush1.msra.mxu0 %v127
    %269 = vmatprep.subr.mxu0 0.0
    %270 = vmatpush1.msra.mxu0 %v128
    %271 = vmatprep.subr.mxu0 0.0
    %272 = vmatpush1.msra.mxu0 %v129
    %273 = vmatprep.subr.mxu0 0.0
    %274 = vmatpush1.msra.mxu0 %v130
    %275 = vmatprep.subr.mxu0 0.0
    %276 = vmatpush1.msra.mxu0 %v131
    %277 = vmatprep.subr.mxu0 0.0
    %278 = vmatpush1.msra.mxu0 %v132
    %279 = vmatprep.subr.mxu0 0.0
    %280 = vmatpush1.msra.mxu0 %v133
    %281 = vmatprep.subr.mxu0 0.0
    %282 = vmatpush1.msra.mxu0 %v134
    %283 = vmatprep.subr.mxu0 0.0
    %284 = vmatpush1.msra.mxu0 %v135
    %285 = vmatprep.subr.mxu0 0.0
    %286 = vmatpush1.msra.mxu0 %v136
    %287 = vmatprep.subr.mxu0 0.0
    %288 = vmatpush1.msra.mxu0 %v137
    %289 = vmatprep.subr.mxu0 0.0
    %290 = vmatpush1.msra.mxu0 %v138
    %291 = vmatprep.subr.mxu0 0.0
    %292 = vmatpush1.msra.mxu0 %v139
    %293 = vmatprep.subr.mxu0 0.0
    %294 = vmatpush1.msra.mxu0 %v140
    %295 = vmatprep.subr.mxu0 0.0
    %296 = vmatpush1.msra.mxu0 %v141
    %297 = vmatprep.subr.mxu0 0.0
    %298 = vmatpush1.msra.mxu0 %v142
    %299 = vmatprep.subr.mxu0 0.0
    %300 = vmatpush1.msra.mxu0 %v143
    %301 = vmatprep.subr.mxu0 0.0
    %302 = vmatpush1.msra.mxu0 %v144
    %303 = vmatprep.subr.mxu0 0.0
    %304 = vmatpush1.msra.mxu0 %v145
    %305 = vmatprep.subr.mxu0 0.0
    %306 = vmatpush1.msra.mxu0 %v146
    %307 = vmatprep.subr.mxu0 0.0
    %308 = vmatpush1.msra.mxu0 %v147
    %309 = vmatprep.subr.mxu0 0.0
    %310 = vmatpush1.msra.mxu0 %v148
    %311 = vmatprep.mubr.f32.mxu0 %v83
    %312 = vmatmul.mubr.f32.gmra.mrb[0].mxu0 %v82
    %v313 = vpop.f32.mrb[0].mxu0
    %v314 = vadd.f32 %v244, %v313
    %v315 = vpop.f32.mrb[0].mxu0
    %316 = vdwg.mxu0
    %317 = vmatprep.subr.mxu0 0.0
    %318 = vmatpush1.msra.mxu0 %v149
    %319 = vmatprep.subr.mxu0 0.0
    %320 = vmatpush1.msra.mxu0 %v150
    %321 = vmatprep.subr.mxu0 0.0
    %322 = vmatpush1.msra.mxu0 %v151
    %323 = vmatprep.subr.mxu0 0.0
    %324 = vmatpush1.msra.mxu0 %v152
    %325 = vmatprep.subr.mxu0 0.0
    %326 = vmatpush1.msra.mxu0 %v153
    %327 = vmatprep.subr.mxu0 0.0
    %328 = vmatpush1.msra.mxu0 %v154
    %329 = vmatprep.subr.mxu0 0.0
    %330 = vmatpush1.msra.mxu0 %v155
    %331 = vmatprep.subr.mxu0 0.0
    %332 = vmatpush1.msra.mxu0 %v156
    %333 = vmatprep.subr.mxu0 0.0
    %334 = vmatpush1.msra.mxu0 %v157
    %335 = vmatprep.subr.mxu0 0.0
    %336 = vmatpush1.msra.mxu0 %v158
    %337 = vmatprep.subr.mxu0 0.0
    %338 = vmatpush1.msra.mxu0 %v159
    %339 = vmatprep.subr.mxu0 0.0
    %340 = vmatpush1.msra.mxu0 %v160
    %341 = vmatprep.subr.mxu0 0.0
    %342 = vmatpush1.msra.mxu0 %v175
    %343 = vmatprep.subr.mxu0 0.0
    %344 = vmatpush1.msra.mxu0 0.0
    %345 = vmatprep.subr.mxu0 0.0
    %346 = vmatpush1.msra.mxu0 0.0
    %347 = vmatprep.subr.mxu0 0.0
    %348 = vmatpush1.msra.mxu0 0.0
    %349 = vmatprep.subr.mxu0 0.0
    %350 = vmatpush1.msra.mxu0 0.0
    %351 = vmatprep.subr.mxu0 0.0
    %352 = vmatpush1.msra.mxu0 0.0
    %353 = vmatprep.subr.mxu0 0.0
    %354 = vmatpush1.msra.mxu0 0.0
    %355 = vmatprep.subr.mxu0 0.0
    %356 = vmatpush1.msra.mxu0 0.0
    %357 = vmatprep.subr.mxu0 0.0
    %358 = vmatpush1.msra.mxu0 0.0
    %359 = vmatprep.subr.mxu0 0.0
    %360 = vmatpush1.msra.mxu0 0.0
    %361 = vmatprep.subr.mxu0 0.0
    %362 = vmatpush1.msra.mxu0 0.0
    %363 = vmatprep.subr.mxu0 0.0
    %364 = vmatpush1.msra.mxu0 0.0
    %365 = vmatprep.subr.mxu0 0.0
    %366 = vmatpush1.msra.mxu0 0.0
    %367 = vmatprep.subr.mxu0 0.0
    %368 = vmatpush1.msra.mxu0 0.0
    %369 = vmatprep.subr.mxu0 0.0
    %370 = vmatpush1.msra.mxu0 0.0
    %371 = vmatprep.subr.mxu0 0.0
    %372 = vmatpush1.msra.mxu0 0.0
    %373 = vmatprep.subr.mxu0 0.0
    %374 = vmatpush1.msra.mxu0 0.0
    %375 = vmatprep.subr.mxu0 0.0
    %376 = vmatpush1.msra.mxu0 0.0
    %377 = vmatprep.subr.mxu0 0.0
    %378 = vmatpush1.msra.mxu0 0.0
    %379 = vmatprep.subr.mxu0 0.0
    %380 = vmatpush1.msra.mxu0 0.0
    %381 = vmatprep.mubr.f32.mxu0 0.0
    %382 = vmatmul.mubr.f32.gmra.mrb[0].mxu0 %v171
    %v383 = vpop.f32.mrb[0].mxu0
    %v384 = vadd.f32 %v314, %v383
    %v385 = vpop.f32.mrb[0].mxu0
    %386 = vdwg.mxu0
    %vm387 = vcmp.gt.f32.partialorder %v384, 0.0
    %v388 = vmul.f32 %v384, 0.01
    %v389 = vsel %vm387, %v384, %v388
    %v390 = vld [vmem:[#allocation7] sm:$0xff]
    %v391 = vld [vmem:[#allocation7 + $0x8] sm:$0xff]
    %v392 = vld [vmem:[#allocation7 + $0x10] sm:$0xff]
    %v393 = vld [vmem:[#allocation7 + $0x18] sm:$0xff]
    %v394 = vld [vmem:[#allocation7 + $0x20] sm:$0xff]
    %v395 = vld [vmem:[#allocation7 + $0x28] sm:$0xff]
    %v396 = vld [vmem:[#allocation7 + $0x30] sm:$0xff]
    %v397 = vld [vmem:[#allocation7 + $0x38] sm:$0xff]
    %v398 = vld [vmem:[#allocation7 + $0x40] sm:$0xff]
    %v399 = vld [vmem:[#allocation7 + $0x48] sm:$0xff]
    %v400 = vld [vmem:[#allocation7 + $0x50] sm:$0xff]
    %v401 = vld [vmem:[#allocation7 + $0x58] sm:$0xff]
    %v402 = vld [vmem:[#allocation7 + $0x60] sm:$0xff]
    %v403 = vld [vmem:[#allocation7 + $0x68] sm:$0xff]
    %v404 = vld [vmem:[#allocation7 + $0x70] sm:$0xff]
    %v405 = vld [vmem:[#allocation7 + $0x78] sm:$0xff]
    %v406 = vld [vmem:[%s4] sm:$0x1]
    %v408 = vlaneseq
    %v409 = vshrl.u32 %v408, 7
    %v410 = vsub.s32 0, %v409
    %v411 = vrot.slane %v406, %v410
    %413 = vmatprep.subr.mxu0 0.0
    %414 = vmatpush1.msra.mxu0 %v390
    %415 = vmatprep.subr.mxu0 0.0
    %416 = vmatpush1.msra.mxu0 %v391
    %417 = vmatprep.subr.mxu0 0.0
    %418 = vmatpush1.msra.mxu0 %v392
    %419 = vmatprep.subr.mxu0 0.0
    %420 = vmatpush1.msra.mxu0 %v393
    %421 = vmatprep.subr.mxu0 0.0
    %422 = vmatpush1.msra.mxu0 %v394
    %423 = vmatprep.subr.mxu0 0.0
    %424 = vmatpush1.msra.mxu0 %v395
    %425 = vmatprep.subr.mxu0 0.0
    %426 = vmatpush1.msra.mxu0 %v396
    %427 = vmatprep.subr.mxu0 0.0
    %428 = vmatpush1.msra.mxu0 %v397
    %429 = vmatprep.subr.mxu0 0.0
    %430 = vmatpush1.msra.mxu0 %v398
    %431 = vmatprep.subr.mxu0 0.0
    %432 = vmatpush1.msra.mxu0 %v399
    %433 = vmatprep.subr.mxu0 0.0
    %434 = vmatpush1.msra.mxu0 %v400
    %435 = vmatprep.subr.mxu0 0.0
    %436 = vmatpush1.msra.mxu0 %v401
    %437 = vmatprep.subr.mxu0 0.0
    %438 = vmatpush1.msra.mxu0 %v402
    %439 = vmatprep.subr.mxu0 0.0
    %440 = vmatpush1.msra.mxu0 %v403
    %441 = vmatprep.subr.mxu0 0.0
    %442 = vmatpush1.msra.mxu0 %v404
    %443 = vmatprep.subr.mxu0 0.0
    %444 = vmatpush1.msra.mxu0 %v405
    %445 = vmatprep.subr.mxu0 0.0
    %446 = vmatpush1.msra.mxu0 0.0
    %447 = vmatprep.subr.mxu0 0.0
    %448 = vmatpush1.msra.mxu0 0.0
    %449 = vmatprep.subr.mxu0 0.0
    %450 = vmatpush1.msra.mxu0 0.0
    %451 = vmatprep.subr.mxu0 0.0
    %452 = vmatpush1.msra.mxu0 0.0
    %453 = vmatprep.subr.mxu0 0.0
    %454 = vmatpush1.msra.mxu0 0.0
    %455 = vmatprep.subr.mxu0 0.0
    %456 = vmatpush1.msra.mxu0 0.0
    %457 = vmatprep.subr.mxu0 0.0
    %458 = vmatpush1.msra.mxu0 0.0
    %459 = vmatprep.subr.mxu0 0.0
    %460 = vmatpush1.msra.mxu0 0.0
    %461 = vmatprep.subr.mxu0 0.0
    %462 = vmatpush1.msra.mxu0 0.0
    %463 = vmatprep.subr.mxu0 0.0
    %464 = vmatpush1.msra.mxu0 0.0
    %465 = vmatprep.subr.mxu0 0.0
    %466 = vmatpush1.msra.mxu0 0.0
    %467 = vmatprep.subr.mxu0 0.0
    %468 = vmatpush1.msra.mxu0 0.0
    %469 = vmatprep.subr.mxu0 0.0
    %470 = vmatpush1.msra.mxu0 0.0
    %471 = vmatprep.subr.mxu0 0.0
    %472 = vmatpush1.msra.mxu0 0.0
    %473 = vmatprep.subr.mxu0 0.0
    %474 = vmatpush1.msra.mxu0 0.0
    %475 = vmatprep.subr.mxu0 0.0
    %476 = vmatpush1.msra.mxu0 0.0
    %477 = vmatprep.mubr.f32.mxu0 0.0
    %478 = vmatmul.mubr.f32.gmra.mrb[0].mxu0 %v389
    %v479 = vpop.f32.mrb[0].mxu0
    %v480 = vadd.f32 %v411, %v479
    %v481 = vpop.f32.mrb[0].mxu0
    %482 = vdwg.mxu0
    %vm483 = vcmp.gt.f32.partialorder %v480, 0.0
    %v484 = vmul.f32 %v480, 0.01
    %v485 = vsel %vm483, %v480, %v484
    %v486 = vld [vmem:[#allocation8] sm:$0xff]
    %v487 = vld [vmem:[#allocation8 + $0x8] sm:$0xff]
    %v488 = vld [vmem:[#allocation8 + $0x10] sm:$0xff]
    %v489 = vld [vmem:[#allocation8 + $0x18] sm:$0xff]
    %v490 = vld [vmem:[#allocation8 + $0x20] sm:$0xff]
    %v491 = vld [vmem:[#allocation8 + $0x28] sm:$0xff]
    %v492 = vld [vmem:[#allocation8 + $0x30] sm:$0xff]
    %v493 = vld [vmem:[#allocation8 + $0x38] sm:$0xff]
    %v494 = vld [vmem:[#allocation8 + $0x40] sm:$0xff]
    %v495 = vld [vmem:[#allocation8 + $0x48] sm:$0xff]
    %v496 = vld [vmem:[#allocation8 + $0x50] sm:$0xff]
    %v497 = vld [vmem:[#allocation8 + $0x58] sm:$0xff]
    %v498 = vld [vmem:[#allocation8 + $0x60] sm:$0xff]
    %v499 = vld [vmem:[#allocation8 + $0x68] sm:$0xff]
    %v500 = vld [vmem:[#allocation8 + $0x70] sm:$0xff]
    %v501 = vld [vmem:[#allocation8 + $0x78] sm:$0xff]
    %v502 = vld [vmem:[%s6] sm:$0x1]
    %v504 = vlaneseq
    %v505 = vshrl.u32 %v504, 7
    %v506 = vsub.s32 0, %v505
    %v507 = vrot.slane %v502, %v506
    %509 = vmatprep.subr.mxu0 0.0
    %510 = vmatpush1.msra.mxu0 %v486
    %511 = vmatprep.subr.mxu0 0.0
    %512 = vmatpush1.msra.mxu0 %v487
    %513 = vmatprep.subr.mxu0 0.0
    %514 = vmatpush1.msra.mxu0 %v488
    %515 = vmatprep.subr.mxu0 0.0
    %516 = vmatpush1.msra.mxu0 %v489
    %517 = vmatprep.subr.mxu0 0.0
    %518 = vmatpush1.msra.mxu0 %v490
    %519 = vmatprep.subr.mxu0 0.0
    %520 = vmatpush1.msra.mxu0 %v491
    %521 = vmatprep.subr.mxu0 0.0
    %522 = vmatpush1.msra.mxu0 %v492
    %523 = vmatprep.subr.mxu0 0.0
    %524 = vmatpush1.msra.mxu0 %v493
    %525 = vmatprep.subr.mxu0 0.0
    %526 = vmatpush1.msra.mxu0 %v494
    %527 = vmatprep.subr.mxu0 0.0
    %528 = vmatpush1.msra.mxu0 %v495
    %529 = vmatprep.subr.mxu0 0.0
    %530 = vmatpush1.msra.mxu0 %v496
    %531 = vmatprep.subr.mxu0 0.0
    %532 = vmatpush1.msra.mxu0 %v497
    %533 = vmatprep.subr.mxu0 0.0
    %534 = vmatpush1.msra.mxu0 %v498
    %535 = vmatprep.subr.mxu0 0.0
    %536 = vmatpush1.msra.mxu0 %v499
    %537 = vmatprep.subr.mxu0 0.0
    %538 = vmatpush1.msra.mxu0 %v500
    %539 = vmatprep.subr.mxu0 0.0
    %540 = vmatpush1.msra.mxu0 %v501
    %541 = vmatprep.subr.mxu0 0.0
    %542 = vmatpush1.msra.mxu0 0.0
    %543 = vmatprep.subr.mxu0 0.0
    %544 = vmatpush1.msra.mxu0 0.0
    %545 = vmatprep.subr.mxu0 0.0
    %546 = vmatpush1.msra.mxu0 0.0
    %547 = vmatprep.subr.mxu0 0.0
    %548 = vmatpush1.msra.mxu0 0.0
    %549 = vmatprep.subr.mxu0 0.0
    %550 = vmatpush1.msra.mxu0 0.0
    %551 = vmatprep.subr.mxu0 0.0
    %552 = vmatpush1.msra.mxu0 0.0
    %553 = vmatprep.subr.mxu0 0.0
    %554 = vmatpush1.msra.mxu0 0.0
    %555 = vmatprep.subr.mxu0 0.0
    %556 = vmatpush1.msra.mxu0 0.0
    %557 = vmatprep.subr.mxu0 0.0
    %558 = vmatpush1.msra.mxu0 0.0
    %559 = vmatprep.subr.mxu0 0.0
    %560 = vmatpush1.msra.mxu0 0.0
    %561 = vmatprep.subr.mxu0 0.0
    %562 = vmatpush1.msra.mxu0 0.0
    %563 = vmatprep.subr.mxu0 0.0
    %564 = vmatpush1.msra.mxu0 0.0
    %565 = vmatprep.subr.mxu0 0.0
    %566 = vmatpush1.msra.mxu0 0.0
    %567 = vmatprep.subr.mxu0 0.0
    %568 = vmatpush1.msra.mxu0 0.0
    %569 = vmatprep.subr.mxu0 0.0
    %570 = vmatpush1.msra.mxu0 0.0
    %571 = vmatprep.subr.mxu0 0.0
    %572 = vmatpush1.msra.mxu0 0.0
    %573 = vmatprep.mubr.f32.mxu0 0.0
    %574 = vmatmul.mubr.f32.gmra.mrb[0].mxu0 %v485
    %v575 = vpop.f32.mrb[0].mxu0
    %v576 = vadd.f32 %v507, %v575
    %v577 = vpop.f32.mrb[0].mxu0
    %578 = vdwg.mxu0
    %579 = vst [vmem:[#allocation10] sm:$0xff] %v576
    // Predicated region
    $region46: #{tpu_custom_call.1} parent=1 // pred_check
      _
    $region47: #{tpu_custom_call.1} parent=1 // pred_check_branch
      %581 = sbr.rel (0) target = $region49
    $region48: #{tpu_custom_call.1} parent=1 // pred_region
      %s583 = ssub.s32 128, 128
      %584 = vsyncadd [#allocation4], %s583
      %s586 = sshll.u32 [#allocation10], 4
      %s587 = int_to_ptr.vmem [resolvable:$true] %s586
      %589 = dma.vmem_to_hbm [thread:$0]  %s587, 128, %s7, [#allocation4]
    $region49: #{tpu_custom_call.1} parent=1 // pred_fallthru
      _
    // Predicated region
    $region50: #{tpu_custom_call.1} parent=1 // pred_check
      _
    $region51: #{tpu_custom_call.1} parent=1 // pred_check_branch
      %591 = sbr.rel (0) target = $region53
    $region52: #{tpu_custom_call.1} parent=1 // pred_region
      %592 = dma.done [#allocation4], 128
    $region53: #{tpu_custom_call.1} parent=1 // pred_fallthru
      _
    %593 = vsyncpa [#allocation3], 1
    %594 = vsyncpa [#allocation6], 1
    %595 = vsyncpa [#allocation9], 1
    %596 = vsyncpa [#allocation4], 1

</llo_original>
